<compile_context>
chip_gen: v7x
topology: tpu7x:2x2x1
jax: 0.10.0
libtpu: 0.0.40
codegen_flags: <defaults>
</compile_context>

<pallas_src>
import functools

import jax
import jax.numpy as jnp
from jax.experimental import pallas as pl
from jax.experimental.pallas import tpu as pltpu


def _softmax_loss_pred_kernel(enc_ref, lab_ref, loss_ref, rr_ref, *,
                              n_total, chunk_n):
    i = pl.program_id(0)
    tile_n = enc_ref.shape[0]
    num_chunks = tile_n // chunk_n            # static

    def _rows(x_raw, labels, row_base):
        """Masked per-row (loss, reciprocal-rank) for one chunk of rows."""
        x = x_raw.astype(jnp.float32)                         # (rows, C) f32
        rows = x.shape[0]

        # valid-row mask (handles the padded edge block of the grid)
        row = jax.lax.broadcasted_iota(jnp.int32, (rows, 1), 0)
        valid = (row_base + row) < n_total                    # (rows, 1) bool

        # fused one-hot extraction: exactly one lane matches per row, so the
        # label score is the max over the label-selected column.
        col = jax.lax.broadcasted_iota(jnp.int32, x.shape, 1)
        actual = jnp.max(jnp.where(col == labels, x, -jnp.inf),
                         axis=-1, keepdims=True)              # (rows, 1)

        # numerically stable log-softmax cross entropy
        m = jnp.max(x, axis=-1, keepdims=True)
        lse = jnp.log(jnp.sum(jnp.exp(x - m), axis=-1, keepdims=True)) + m
        per_row_loss = lse - actual                           # (rows, 1)

        # MRR: rank of the true-class score (ties counted), exact reciprocal
        rank = jnp.sum((x >= actual).astype(jnp.float32), axis=-1, keepdims=True)
        rr = 1.0 / rank

        # selects (not multiplies): garbage in padded rows cannot leak NaN/Inf
        return (jnp.where(valid, per_row_loss, 0.0),
                jnp.where(valid, rr, 0.0))

    if num_chunks == 1:
        loss_vec, rr_vec = _rows(enc_ref[...], lab_ref[...], i * tile_n)
    else:
        def body(s, carry):
            loss_acc, rr_acc = carry
            r0 = pl.multiple_of(s * chunk_n, chunk_n)
            l, r = _rows(enc_ref[pl.ds(r0, chunk_n), :],
                         lab_ref[pl.ds(r0, chunk_n), :],
                         i * tile_n + r0)
            # per-row vector accumulate (pure VPU); single reduce at the end
            return loss_acc + l, rr_acc + r

        init = (jnp.zeros((chunk_n, 1), jnp.float32),
                jnp.zeros((chunk_n, 1), jnp.float32))
        loss_vec, rr_vec = jax.lax.fori_loop(0, num_chunks, body, init,
                                             unroll=True)

    # lane-dense (8, 128) partial-sum block per tile; reduced (+ /N) in wrapper
    loss_ref[...] = jnp.full((1, 8, 128), jnp.sum(loss_vec), dtype=jnp.float32)
    rr_ref[...] = jnp.full((1, 8, 128), jnp.sum(rr_vec), dtype=jnp.float32)


def _pick_tiles(n, c, itemsize):
    """(tile_n, chunk_n): native-dtype DMA tile + vreg-friendly compute chunk."""
    pack = 8 * max(1, 4 // itemsize)          # sublane packing: 8/16/32
    # compute chunk: ~128 KiB of f32 per full-width temporary
    chunk = (128 << 10) // (4 * c)
    chunk = max(pack, (chunk // pack) * pack)
    chunk = min(chunk, 512)
    if n <= chunk:
        return n, n                           # single block == full array dims
    # DMA tile: ~4 MiB of logits in native dtype, a multiple of the chunk,
    # with the in-kernel unrolled chunk loop bounded.
    budget = 4 << 20
    tile = budget // (itemsize * c)
    tile = max(chunk, (tile // chunk) * chunk)
    tile = min(tile, 32 * chunk)
    tile = min(tile, (n // chunk) * chunk)    # tile <= n; last grid block padded
    return tile, chunk


def softmax_loss_pred(enc_code, labels, tile_n=None, chunk_n=None):
    """enc_code: (N, C) logits (any float dtype); labels: (1, N) int."""
    labels = jnp.squeeze(labels, axis=0)               # torch .squeeze(0)
    n, c = enc_code.shape
    labels2d = labels.astype(jnp.int32).reshape(n, 1)
    itemsize = jnp.dtype(enc_code.dtype).itemsize

    auto_tile, auto_chunk = _pick_tiles(n, c, itemsize)
    if tile_n is None:
        tile_n = auto_tile
    if chunk_n is None:
        chunk_n = auto_chunk if tile_n == auto_tile else tile_n
    assert tile_n % chunk_n == 0, (tile_n, chunk_n)
    num_tiles = pl.cdiv(n, tile_n)

    kernel = functools.partial(_softmax_loss_pred_kernel,
                               n_total=n, chunk_n=chunk_n)

    # double-buffered logits block (native dtype) + labels + headroom for the
    # chunk-sized f32 temporaries; keeps v5e (16 MiB scoped) from being the cap.
    tile_bytes = tile_n * c * itemsize
    vmem_limit = int(min(64 << 20,
                         max(16 << 20, 2 * tile_bytes + 8 * tile_n + (4 << 20))))

    cost = pl.CostEstimate(
        flops=8 * n * c,
        transcendentals=n * c + 2 * n,
        bytes_accessed=n * c * itemsize + 4 * n + 2 * num_tiles * 8 * 128 * 4,
    )

    loss_parts, rr_parts = pl.pallas_call(
        kernel,
        out_shape=(
            jax.ShapeDtypeStruct((num_tiles, 8, 128), jnp.float32),
            jax.ShapeDtypeStruct((num_tiles, 8, 128), jnp.float32),
        ),
        grid=(num_tiles,),
        in_specs=[
            pl.BlockSpec((tile_n, c), lambda i: (i, 0)),   # native dtype stream
            pl.BlockSpec((tile_n, 1), lambda i: (i, 0)),
        ],
        out_specs=(
            pl.BlockSpec((1, 8, 128), lambda i: (i, 0, 0)),
            pl.BlockSpec((1, 8, 128), lambda i: (i, 0, 0)),
        ),
        compiler_params=pltpu.CompilerParams(
            dimension_semantics=("parallel",),
            vmem_limit_bytes=vmem_limit),
        cost_estimate=cost,
    )(enc_code, labels2d)

    inv_n = jnp.float32(1.0 / n)
    loss = jnp.sum(loss_parts[:, 0, 0]) * inv_n
    mrr = jnp.sum(rr_parts[:, 0, 0]) * inv_n
    return loss, mrr


def _reference(enc_code, labels):
    """Pure-JAX reference mirroring the PyTorch forward."""
    labels = jnp.squeeze(labels, axis=0)
    x = enc_code.astype(jnp.float32)
    n, c = x.shape
    one_hot = jax.nn.one_hot(labels, c, dtype=jnp.float32)
    lse = jax.scipy.special.logsumexp(x, axis=-1)
    actual = jnp.sum(x * one_hot, axis=-1)
    loss = jnp.mean(lse - actual)
    compared = (x >= actual[:, None]).astype(jnp.float32)
    rr = 1.0 / jnp.sum(compared, axis=-1)
    mrr = jnp.mean(rr)
    return loss, mrr


if __name__ == "__main__":
    key = jax.random.PRNGKey(0)
    k1, k2, k3, k4 = jax.random.split(key, 4)

    # Case 1: tiny f32 demo shape -> single full-array block (grid of 1).
    N, C = 8, 32
    enc_code = jax.random.normal(k1, (N, C), dtype=jnp.float32)
    labels = jax.random.randint(k2, (1, N), 0, C, dtype=jnp.int32)

    loss, mrr = softmax_loss_pred(enc_code, labels)
    jax.block_until_ready((loss, mrr))
    ref_loss, ref_mrr = _reference(enc_code, labels)
    assert jnp.allclose(loss, ref_loss, atol=1e-5), (loss, ref_loss)
    assert jnp.allclose(mrr, ref_mrr, atol=1e-6), (mrr, ref_mrr)

    # Case 2: bf16 logits streamed in native dtype, explicit multi-tile grid
    # with an in-tile chunk loop and a partially-filled last tile (exercises
    # masking, the parallel per-tile partial sums and the wrapper reduction).
    N2, C2 = 300, 64
    enc2 = jax.random.normal(k3, (N2, C2), dtype=jnp.float32).astype(jnp.bfloat16)
    labels2 = jax.random.randint(k4, (1, N2), 0, C2, dtype=jnp.int32)

    loss2, mrr2 = softmax_loss_pred(enc2, labels2, tile_n=128, chunk_n=64)
    jax.block_until_ready((loss2, mrr2))
    ref_loss2, ref_mrr2 = _reference(enc2, labels2)
    assert jnp.allclose(loss2, ref_loss2, atol=1e-4, rtol=1e-4), (loss2, ref_loss2)
    assert jnp.allclose(mrr2, ref_mrr2, atol=1e-5), (mrr2, ref_mrr2)

    # Case 3: same bf16 inputs via the auto tile picker (single native-dtype
    # full-array block).
    loss3, mrr3 = softmax_loss_pred(enc2, labels2)
    jax.block_until_ready((loss3, mrr3))
    assert jnp.allclose(loss3, ref_loss2, atol=1e-4, rtol=1e-4), (loss3, ref_loss2)
    assert jnp.allclose(mrr3, ref_mrr2, atol=1e-5), (mrr3, ref_mrr2)

    print("KERNEL_OK")
</pallas_src>

<mosaic_0001>
module attributes {stable_mosaic.version = 11 : i64} {
  func.func @_softmax_loss_pred_kernel(%arg0: i32, %arg1: memref<8x32xf32, #tpu.memory_space<vmem>>, %arg2: memref<8x1xi32, #tpu.memory_space<vmem>>, %arg3: memref<1x8x128xf32, #tpu.memory_space<vmem>>, %arg4: memref<1x8x128xf32, #tpu.memory_space<vmem>>) attributes {dimension_semantics = [#tpu.dimension_semantics<parallel>], iteration_bounds = array<i64: 1>, scalar_prefetch = 0 : i64, scratch_operands = 0 : i64, tpu.core_type = #tpu.core_type<tc>, window_params = [{transform_indices = @transform_0, window_bounds = array<i64: 8, 32>}, {transform_indices = @transform_1, window_bounds = array<i64: 8, 1>}, {transform_indices = @transform_2, window_bounds = array<i64: 1, 8, 128>}, {transform_indices = @transform_3, window_bounds = array<i64: 1, 8, 128>}]} {
    %c0 = arith.constant 0 : index
    %c0_0 = arith.constant 0 : index
    %0 = vector.load %arg1[%c0, %c0_0] : memref<8x32xf32, #tpu.memory_space<vmem>>, vector<8x32xf32>
    %c0_1 = arith.constant 0 : index
    %c0_2 = arith.constant 0 : index
    %1 = vector.load %arg2[%c0_1, %c0_2] : memref<8x1xi32, #tpu.memory_space<vmem>>, vector<8x1xi32>
    %c8_i32 = arith.constant 8 : i32
    %2 = arith.muli %arg0, %c8_i32 : i32
    %3 = tpu.iota {dimensions = array<i32: 0>} : vector<8x1xi32>
    %4 = vector.broadcast %2 : i32 to vector<8x1xi32>
    %5 = arith.addi %4, %3 : vector<8x1xi32>
    %c8_i32_3 = arith.constant 8 : i32
    %6 = vector.broadcast %c8_i32_3 : i32 to vector<8x1xi32>
    %7 = arith.cmpi slt, %5, %6 : vector<8x1xi32>
    %8 = tpu.iota {dimensions = array<i32: 1>} : vector<8x32xi32>
    %9 = vector.broadcast %1 : vector<8x1xi32> to vector<8x32xi32>
    %10 = arith.cmpi eq, %8, %9 : vector<8x32xi32>
    %cst = arith.constant 0xFF800000 : f32
    %11 = vector.broadcast %cst : f32 to vector<8x32xf32>
    %12 = arith.select %10, %0, %11 : vector<8x32xi1>, vector<8x32xf32>
    %cst_4 = arith.constant dense<0xFF800000> : vector<8xf32>
    %13 = vector.multi_reduction <maximumf>, %12, %cst_4 [1] : vector<8x32xf32> to vector<8xf32>
    %14 = vector.shape_cast %13 : vector<8xf32> to vector<8x1xf32>
    %cst_5 = arith.constant dense<0xFF800000> : vector<8xf32>
    %15 = vector.multi_reduction <maximumf>, %0, %cst_5 [1] : vector<8x32xf32> to vector<8xf32>
    %16 = vector.shape_cast %15 : vector<8xf32> to vector<8x1xf32>
    %17 = vector.broadcast %16 : vector<8x1xf32> to vector<8x32xf32>
    %18 = arith.subf %0, %17 : vector<8x32xf32>
    %19 = math.exp %18 : vector<8x32xf32>
    %cst_6 = arith.constant dense<0.000000e+00> : vector<8xf32>
    %20 = vector.multi_reduction <add>, %19, %cst_6 [1] : vector<8x32xf32> to vector<8xf32>
    %21 = vector.shape_cast %20 : vector<8xf32> to vector<8x1xf32>
    %22 = math.log %21 : vector<8x1xf32>
    %23 = arith.addf %22, %16 : vector<8x1xf32>
    %24 = arith.subf %23, %14 : vector<8x1xf32>
    %25 = vector.broadcast %14 : vector<8x1xf32> to vector<8x32xf32>
    %26 = arith.cmpf oge, %0, %25 : vector<8x32xf32>
    %27 = arith.extui %26 : vector<8x32xi1> to vector<8x32xi32>
    %28 = arith.sitofp %27 : vector<8x32xi32> to vector<8x32xf32>
    %cst_7 = arith.constant dense<0.000000e+00> : vector<8xf32>
    %29 = vector.multi_reduction <add>, %28, %cst_7 [1] : vector<8x32xf32> to vector<8xf32>
    %30 = vector.shape_cast %29 : vector<8xf32> to vector<8x1xf32>
    %cst_8 = arith.constant 1.000000e+00 : f32
    %31 = vector.broadcast %cst_8 : f32 to vector<8x1xf32>
    %32 = arith.divf %31, %30 : vector<8x1xf32>
    %cst_9 = arith.constant 0.000000e+00 : f32
    %33 = vector.broadcast %cst_9 : f32 to vector<8x1xf32>
    %34 = arith.select %7, %24, %33 : vector<8x1xi1>, vector<8x1xf32>
    %cst_10 = arith.constant 0.000000e+00 : f32
    %35 = vector.broadcast %cst_10 : f32 to vector<8x1xf32>
    %36 = arith.select %7, %32, %35 : vector<8x1xi1>, vector<8x1xf32>
    %37 = vector.shape_cast %34 : vector<8x1xf32> to vector<1x8x1xf32>
    %cst_11 = arith.constant dense<0.000000e+00> : vector<1xf32>
    %38 = vector.multi_reduction <add>, %37, %cst_11 [1, 2] : vector<1x8x1xf32> to vector<1xf32>
    %39 = vector.shape_cast %38 : vector<1xf32> to vector<1x1x1xf32>
    %40 = vector.extract %39[0, 0, 0] : f32 from vector<1x1x1xf32>
    %41 = vector.broadcast %40 : f32 to vector<1x8x128xf32>
    %c0_12 = arith.constant 0 : index
    %c0_13 = arith.constant 0 : index
    %c0_14 = arith.constant 0 : index
    %42 = vector.load %arg3[%c0_12, %c0_13, %c0_14] : memref<1x8x128xf32, #tpu.memory_space<vmem>>, vector<1x8x128xf32>
    tpu.vector_store %arg3[%c0_12, %c0_13, %c0_14], %41 {strides = array<i32>} : memref<1x8x128xf32, #tpu.memory_space<vmem>>, vector<1x8x128xf32>,
    %43 = vector.shape_cast %36 : vector<8x1xf32> to vector<1x8x1xf32>
    %cst_15 = arith.constant dense<0.000000e+00> : vector<1xf32>
    %44 = vector.multi_reduction <add>, %43, %cst_15 [1, 2] : vector<1x8x1xf32> to vector<1xf32>
    %45 = vector.shape_cast %44 : vector<1xf32> to vector<1x1x1xf32>
    %46 = vector.extract %45[0, 0, 0] : f32 from vector<1x1x1xf32>
    %47 = vector.broadcast %46 : f32 to vector<1x8x128xf32>
    %c0_16 = arith.constant 0 : index
    %c0_17 = arith.constant 0 : index
    %c0_18 = arith.constant 0 : index
    %48 = vector.load %arg4[%c0_16, %c0_17, %c0_18] : memref<1x8x128xf32, #tpu.memory_space<vmem>>, vector<1x8x128xf32>
    tpu.vector_store %arg4[%c0_16, %c0_17, %c0_18], %47 {strides = array<i32>} : memref<1x8x128xf32, #tpu.memory_space<vmem>>, vector<1x8x128xf32>,
    return
  }
  func.func @transform_0(%arg0: i32) -> (i32, i32) {
    %c0_i32 = arith.constant 0 : i32
    %c0_i32_0 = arith.constant 0 : i32
    return %arg0, %c0_i32 : i32, i32
  }
  func.func @transform_1(%arg0: i32) -> (i32, i32) {
    %c0_i32 = arith.constant 0 : i32
    %c0_i32_0 = arith.constant 0 : i32
    return %arg0, %c0_i32 : i32, i32
  }
  func.func @transform_2(%arg0: i32) -> (i32, i32, i32) {
    %c0_i32 = arith.constant 0 : i32
    %c0_i32_0 = arith.constant 0 : i32
    %c0_i32_1 = arith.constant 0 : i32
    return %arg0, %c0_i32, %c0_i32_0 : i32, i32, i32
  }
  func.func @transform_3(%arg0: i32) -> (i32, i32, i32) {
    %c0_i32 = arith.constant 0 : i32
    %c0_i32_0 = arith.constant 0 : i32
    %c0_i32_1 = arith.constant 0 : i32
    return %arg0, %c0_i32, %c0_i32_0 : i32, i32, i32
  }
}

</mosaic_0001>

<llo_original>
// kernel: tpu_custom_call.1
$region0: #{tpu_custom_call.1}
  #allocation0 [shape = 'u32[]', space=smem, size = 0x4, offset = 0x4, fixed_abs, tag = 'smem constant byte address 0x4 - core index']
  #allocation1 [shape = 'u32[144,128]{1,0:T(1,128)}', space=vmem, size = 0x12000, scoped, tag = 'internal scratch']
  %s0 = inlined_call_operand.vmem [shape: f32[8,32], index: 0, kind: input, shape index: {}]
  %s1 = inlined_call_operand.vmem [shape: s32[8,1], index: 1, kind: input, shape index: {}]
  %s2 = inlined_call_operand.hbm [shape: f32[1,8,128], index: 2, kind: output, shape index: {0}]
  %s3 = inlined_call_operand.hbm [shape: f32[1,8,128], index: 3, kind: output, shape index: {1}]
  %4 = xla_tuple %s2, %s3
  %s5 = sld [smem:[#allocation0]]
  $region26: #{tpu_custom_call.1} parent=0
    _
  %s7 = ssub.s32 1, %s5
  %s8 = scalar_select 0, %s7, %s5
  $region1: #{tpu_custom_call.1} parent=0
    #allocation2 [shape = 'u8[4096]{0}', space=vmem, size = 0x1000, scoped, tag = 'output window, operand 0, single buffered']
    #allocation3 [shape = 's32[1]{0}', space=sflag, size = 0x4, scoped, tag = 'scoped memory for tpu_custom_call.1']
    #allocation4 [shape = 'u8[4096]{0}', space=vmem, size = 0x1000, scoped, tag = 'output window, operand 1, single buffered']
    #allocation5 [shape = 's32[1]{0}', space=sflag, size = 0x4, scoped, tag = 'scoped memory for tpu_custom_call.1']
    %9 = vsyncpa [#allocation3], 0
    %10 = vsyncpa [#allocation5], 0
    // Predicated region
    $region2: #{tpu_custom_call.1} parent=1 // pred_check
      _
    $region3: #{tpu_custom_call.1} parent=1 // pred_check_branch
      %12 = sbr.rel (0) target = $region5
    $region4: #{tpu_custom_call.1} parent=1 // pred_region
      _
    $region5: #{tpu_custom_call.1} parent=1 // pred_fallthru
      _
    // Predicated region
    $region6: #{tpu_custom_call.1} parent=1 // pred_check
      _
    $region7: #{tpu_custom_call.1} parent=1 // pred_check_branch
      %14 = sbr.rel (0) target = $region9
    $region8: #{tpu_custom_call.1} parent=1 // pred_region
      _
    $region9: #{tpu_custom_call.1} parent=1 // pred_fallthru
      _
    %v15 = vld [vmem:[%s0] sm:$0xff]
    %v16 = vld [vmem:[%s1] sm:$0xff]
    %s17 = smul.u32 0, 8
    %v18 = vlaneseq
    %v19 = vshrl.u32 %v18, 7
    %v20 = vstv %s17
    %v21 = vadd.s32 %v20, %v19
    %vm22 = vcmp.lt.s32.totalorder %v21, 8
    %v23 = vlaneseq
    %v24 = vand.u32 %v23, 127
    %25 = vset.pattern.permute.xlu0 0
    %26 = vperm.xlu0 %25, %v16
    %v27 = vpop.permute.xlu0 %26
    %vm28 = vcmp.eq.s32.totalorder %v24, %v27
    %v29 = vsel %vm28, %v15, -inf
    %vm30 = vcmask 261120
    %v31 = vsel %vm30, %v29, -inf
    %32 = vmax.xlane.f32.xlu0 %v31
    %v33 = vpop.xlane.xlu0 %32
    %v34 = vsel %vm30, %v15, -inf
    %35 = vmax.xlane.f32.xlu0 %v34
    %v36 = vpop.xlane.xlu0 %35
    %v37 = vsub.f32 %v15, %v36
    %v38 = vmul.f32 %v37, 1.442695
    %v39 = vpow.pop %v38
    %v40 = vsel %vm30, %v39, 0.0
    %41 = vadd.xlane.f32.xlu0 %v40
    %v42 = vpop.xlane.xlu0 %41
    %v43 = vlog2.pop %v42
    %v44 = vmul.f32 %v43, 0.6931472
    %v45 = vadd.f32 %v44, %v36
    %v46 = vsub.f32 %v45, %v33
    %vm47 = vcmp.ge.f32.partialorder %v15, %v33
    %v48 = vsel %vm47, 1, 0
    %v49 = vcvt.s32.f32 %v48
    %v50 = vsel %vm30, %v49, 0.0
    %51 = vadd.xlane.f32.xlu0 %v50
    %v52 = vpop.xlane.xlu0 %51
    %v53 = vrcp.pop %v52
    %v54 = vmul.f32 1.0, %v53
    %v55 = vsel %vm22, %v46, 0.0
    %v56 = vsel %vm22, %v54, 0.0
    %vm57 = vcmask 7168
    %v58 = vsel %vm57, %v55, 0.0
    %59 = vadd.xlane.f32.xlu0 %v58
    %v60 = vpop.xlane.xlu0 %59
    %v61 = vrot.slane %v60, 4
    %v62 = vadd.f32 %v60, %v61
    %v63 = vrot.slane %v62, 2
    %v64 = vadd.f32 %v62, %v63
    %v65 = vrot.slane %v64, 1
    %v66 = vadd.f32 %v64, %v65
    %s67 = vtos %v66
    %v68 = vstv %s67
    %69 = vst [vmem:[#allocation2] sm:$0xff] %v68
    %v70 = vsel %vm57, %v56, 0.0
    %71 = vadd.xlane.f32.xlu0 %v70
    %v72 = vpop.xlane.xlu0 %71
    %v73 = vrot.slane %v72, 4
    %v74 = vadd.f32 %v72, %v73
    %v75 = vrot.slane %v74, 2
    %v76 = vadd.f32 %v74, %v75
    %v77 = vrot.slane %v76, 1
    %v78 = vadd.f32 %v76, %v77
    %s79 = vtos %v78
    %v80 = vstv %s79
    %81 = vst [vmem:[#allocation4] sm:$0xff] %v80
    // Predicated region
    $region10: #{tpu_custom_call.1} parent=1 // pred_check
      _
    $region11: #{tpu_custom_call.1} parent=1 // pred_check_branch
      %83 = sbr.rel (0) target = $region13
    $region12: #{tpu_custom_call.1} parent=1 // pred_region
      %s85 = ssub.s32 128, 128
      %86 = vsyncadd [#allocation3], %s85
      %s88 = sshll.u32 [#allocation2], 4
      %s89 = int_to_ptr.vmem [resolvable:$true] %s88
      %91 = dma.vmem_to_hbm [thread:$0]  %s89, 128, %s2, [#allocation3]
    $region13: #{tpu_custom_call.1} parent=1 // pred_fallthru
      _
    // Predicated region
    $region14: #{tpu_custom_call.1} parent=1 // pred_check
      _
    $region15: #{tpu_custom_call.1} parent=1 // pred_check_branch
      %93 = sbr.rel (0) target = $region17
    $region16: #{tpu_custom_call.1} parent=1 // pred_region
      %s95 = ssub.s32 128, 128
      %96 = vsyncadd [#allocation5], %s95
      %s98 = sshll.u32 [#allocation4], 4
      %s99 = int_to_ptr.vmem [resolvable:$true] %s98
      %101 = dma.vmem_to_hbm [thread:$0]  %s99, 128, %s3, [#allocation5]
    $region17: #{tpu_custom_call.1} parent=1 // pred_fallthru
      _
    // Predicated region
    $region18: #{tpu_custom_call.1} parent=1 // pred_check
      _
    $region19: #{tpu_custom_call.1} parent=1 // pred_check_branch
      %103 = sbr.rel (0) target = $region21
    $region20: #{tpu_custom_call.1} parent=1 // pred_region
      %104 = dma.done [#allocation3], 128
    $region21: #{tpu_custom_call.1} parent=1 // pred_fallthru
      _
    // Predicated region
    $region22: #{tpu_custom_call.1} parent=1 // pred_check
      _
    $region23: #{tpu_custom_call.1} parent=1 // pred_check_branch
      %106 = sbr.rel (0) target = $region25
    $region24: #{tpu_custom_call.1} parent=1 // pred_region
      %107 = dma.done [#allocation5], 128
    $region25: #{tpu_custom_call.1} parent=1 // pred_fallthru
      _
    %108 = vsyncpa [#allocation3], 1
    %109 = vsyncpa [#allocation5], 1

</llo_original>
